<compile_context>
chip_gen: v5e
topology: v5e:2x2
jax: 0.10.0
libtpu: 0.0.40
codegen_flags: <defaults>
</compile_context>

<pallas_src>
import jax
import jax.numpy as jnp
import numpy as np
from jax.experimental import pallas as pl
from jax.experimental.pallas import tpu as pltpu


def _attention_head_kernel(x_ref, w_ref, b_ref, mask_ref, o_ref, qkv_ref):
    B, S, dim_inp = x_ref.shape
    DP = o_ref.shape[-1]                        # padded head dim (multiple of 128)

    # ---- fused QKV projection: one (B*S, dim_inp) @ (dim_inp, 3*DP) MXU push
    x2 = x_ref[...].reshape(B * S, dim_inp)
    qkv_ref[...] = (jnp.dot(x2, w_ref[...], preferred_element_type=jnp.float32)
                    + b_ref[...])

    # torch: scale = query.size(1) ** 0.5 == sqrt(S); fold into q (const VPU mul)
    inv_scale = jnp.float32(1.0 / (S ** 0.5))
    q = (qkv_ref[:, 0 * DP:1 * DP] * inv_scale).reshape(B, S, DP)
    k = qkv_ref[:, 1 * DP:2 * DP].reshape(B, S, DP)
    v = qkv_ref[:, 2 * DP:3 * DP].reshape(B, S, DP)

    # ---- scores = q @ k^T  (batched; contraction on last dims, no transpose)
    scores = jax.lax.dot_general(
        q, k, dimension_numbers=(((2,), (2,)), ((0,), (0,))),
        preferred_element_type=jnp.float32)                     # (B, S, S)

    mask = mask_ref[...]                                        # int8
    scores = jnp.where(mask != 0, jnp.float32(-1e9), scores)

    # ---- numerically stable softmax (exact divide; approx reciprocal was
    #      outside the 1e-3 accuracy budget and is not on the critical path)
    m = jnp.max(scores, axis=-1, keepdims=True)
    e = jnp.exp(scores - m)
    l = jnp.sum(e, axis=-1, keepdims=True)
    attn = e / l

    # ---- context = attn @ v  (batched)
    o_ref[...] = jax.lax.dot_general(
        attn, v, dimension_numbers=(((2,), (1,)), ((0,), (0,))),
        preferred_element_type=jnp.float32)                     # (B, S, DP)


def attention_head(x, wq, bq, wk, bk, wv, bv, mask):
    """x: (B, S, dim_inp) f32; w*: (dim_inp, dim_out); b*: (dim_out,);
    mask: (B, S, S), nonzero/True => masked.  Returns (B, S, dim_out) f32."""
    B, S, dim_inp = x.shape
    dim_out = wq.shape[1]
    DP = max(128, ((dim_out + 127) // 128) * 128)   # lane-dense padded head dim

    def pad_w(w):
        return jnp.pad(w, ((0, 0), (0, DP - dim_out)))

    def pad_b(b):
        return jnp.pad(b, (0, DP - dim_out))

    # fused, lane-padded QKV weight/bias: (dim_inp, 3*DP) / (1, 3*DP)
    w_qkv = jnp.concatenate([pad_w(wq), pad_w(wk), pad_w(wv)], axis=1)
    b_qkv = jnp.concatenate([pad_b(bq), pad_b(bk), pad_b(bv)]).reshape(1, 3 * DP)

    mask_i8 = (mask != 0).astype(jnp.int8)          # 4x less HBM than f32 mask

    out_padded = pl.pallas_call(
        _attention_head_kernel,
        out_shape=jax.ShapeDtypeStruct((B, S, DP), jnp.float32),
        grid_spec=pltpu.PrefetchScalarGridSpec(
            num_scalar_prefetch=0,
            grid=(1,),                               # whole problem in one step
            in_specs=[
                pl.BlockSpec((B, S, dim_inp), lambda i: (0, 0, 0)),
                pl.BlockSpec((dim_inp, 3 * DP), lambda i: (0, 0)),
                pl.BlockSpec((1, 3 * DP), lambda i: (0, 0)),
                pl.BlockSpec((B, S, S), lambda i: (0, 0, 0)),
            ],
            out_specs=pl.BlockSpec((B, S, DP), lambda i: (0, 0, 0)),
            scratch_shapes=[pltpu.VMEM((B * S, 3 * DP), jnp.float32)],
        ),
        compiler_params=pltpu.CompilerParams(
            dimension_semantics=("arbitrary",)),
    )(x, w_qkv, b_qkv, mask_i8)

    return out_padded[:, :, :dim_out]


def _reference(x, wq, bq, wk, bk, wv, bv, mask):
    q = x @ wq + bq
    k = x @ wk + bk
    v = x @ wv + bv
    scale = q.shape[1] ** 0.5                      # sqrt(S), as in the module
    scores = jnp.einsum("bsd,btd->bst", q, k) / scale
    scores = jnp.where(mask != 0, -1e9, scores)
    attn = jax.nn.softmax(scores, axis=-1)
    return jnp.einsum("bst,btd->bsd", attn, v)


if __name__ == "__main__":
    B, S, dim_inp, dim_out = 2, 8, 32, 32

    key = jax.random.PRNGKey(0)
    kx, kq, kk, kv, kbq, kbk, kbv, km = jax.random.split(key, 8)

    x = jax.random.normal(kx, (B, S, dim_inp), dtype=jnp.float32)

    # deterministic Linear-like init: U(-1/sqrt(dim_inp), 1/sqrt(dim_inp))
    bound = 1.0 / (dim_inp ** 0.5)
    wq = jax.random.uniform(kq, (dim_inp, dim_out), jnp.float32, -bound, bound)
    wk = jax.random.uniform(kk, (dim_inp, dim_out), jnp.float32, -bound, bound)
    wv = jax.random.uniform(kv, (dim_inp, dim_out), jnp.float32, -bound, bound)
    bq = jax.random.uniform(kbq, (dim_out,), jnp.float32, -bound, bound)
    bk = jax.random.uniform(kbk, (dim_out,), jnp.float32, -bound, bound)
    bv = jax.random.uniform(kbv, (dim_out,), jnp.float32, -bound, bound)

    # boolean mask (True => masked), e.g. mask out the last 2 key positions
    mask = jnp.zeros((B, S, S), dtype=bool).at[:, :, -2:].set(True)

    out = attention_head(x, wq, bq, wk, bk, wv, bv, mask)
    out = jax.block_until_ready(out)

    ref = _reference(x, wq, bq, wk, bk, wv, bv, mask)
    np.testing.assert_allclose(np.asarray(out), np.asarray(ref),
                               atol=1e-3, rtol=1e-3)

    print("KERNEL_OK")
</pallas_src>

<mosaic_0001>
module attributes {stable_mosaic.version = 11 : i64} {
  func.func @_attention_head_kernel(%arg0: i32, %arg1: memref<2x8x32xf32, #tpu.memory_space<vmem>>, %arg2: memref<32x384xf32, #tpu.memory_space<vmem>>, %arg3: memref<1x384xf32, #tpu.memory_space<vmem>>, %arg4: memref<2x8x8xi8, #tpu.memory_space<vmem>>, %arg5: memref<2x8x128xf32, #tpu.memory_space<vmem>>, %arg6: memref<16x384xf32, #tpu.memory_space<vmem>>) attributes {dimension_semantics = [#tpu.dimension_semantics<arbitrary>], iteration_bounds = array<i64: 1>, scalar_prefetch = 0 : i64, scratch_operands = 1 : i64, tpu.core_type = #tpu.core_type<tc>, window_params = [{pipeline_mode = #tpu.pipeline_mode<synchronous>, transform_indices = @transform_0, window_bounds = array<i64: 2, 8, 32>}, {pipeline_mode = #tpu.pipeline_mode<synchronous>, transform_indices = @transform_1, window_bounds = array<i64: 32, 384>}, {pipeline_mode = #tpu.pipeline_mode<synchronous>, transform_indices = @transform_2, window_bounds = array<i64: 1, 384>}, {pipeline_mode = #tpu.pipeline_mode<synchronous>, transform_indices = @transform_3, window_bounds = array<i64: 2, 8, 8>}, {pipeline_mode = #tpu.pipeline_mode<synchronous>, transform_indices = @transform_4, window_bounds = array<i64: 2, 8, 128>}]} {
    %c0 = arith.constant 0 : index
    %c0_0 = arith.constant 0 : index
    %c0_1 = arith.constant 0 : index
    %0 = vector.load %arg1[%c0, %c0_0, %c0_1] : memref<2x8x32xf32, #tpu.memory_space<vmem>>, vector<2x8x32xf32>
    %1 = vector.shape_cast %0 : vector<2x8x32xf32> to vector<16x32xf32>
    %c0_2 = arith.constant 0 : index
    %c0_3 = arith.constant 0 : index
    %2 = vector.load %arg2[%c0_2, %c0_3] : memref<32x384xf32, #tpu.memory_space<vmem>>, vector<32x384xf32>
    %cst = arith.constant dense<0.000000e+00> : vector<16x384xf32>
    %3 = tpu.matmul %1, %2, %cst {dimension_numbers = #tpu.dot_dimension_numbers<[1], [0], [0], [1], [0, 0, 1, 1], [], []>} : vector<16x32xf32>, vector<32x384xf32>, vector<16x384xf32> -> vector<16x384xf32>
    %c0_4 = arith.constant 0 : index
    %c0_5 = arith.constant 0 : index
    %4 = vector.load %arg3[%c0_4, %c0_5] : memref<1x384xf32, #tpu.memory_space<vmem>>, vector<1x384xf32>
    %5 = vector.broadcast %4 : vector<1x384xf32> to vector<16x384xf32>
    %6 = arith.addf %3, %5 : vector<16x384xf32>
    %c0_6 = arith.constant 0 : index
    %c0_7 = arith.constant 0 : index
    %7 = vector.load %arg6[%c0_6, %c0_7] : memref<16x384xf32, #tpu.memory_space<vmem>>, vector<16x384xf32>
    tpu.vector_store %arg6[%c0_6, %c0_7], %6 {strides = array<i32>} : memref<16x384xf32, #tpu.memory_space<vmem>>, vector<16x384xf32>,
    %c0_8 = arith.constant 0 : index
    %c0_9 = arith.constant 0 : index
    %8 = vector.load %arg6[%c0_8, %c0_9] : memref<16x384xf32, #tpu.memory_space<vmem>>, vector<16x128xf32>
    %cst_10 = arith.constant 0.353553385 : f32
    %9 = vector.broadcast %cst_10 : f32 to vector<16x128xf32>
    %10 = arith.mulf %8, %9 : vector<16x128xf32>
    %11 = vector.shape_cast %10 : vector<16x128xf32> to vector<2x8x128xf32>
    %c0_11 = arith.constant 0 : index
    %c128 = arith.constant 128 : index
    %12 = vector.load %arg6[%c0_11, %c128] : memref<16x384xf32, #tpu.memory_space<vmem>>, vector<16x128xf32>
    %13 = vector.shape_cast %12 : vector<16x128xf32> to vector<2x8x128xf32>
    %c0_12 = arith.constant 0 : index
    %c256 = arith.constant 256 : index
    %14 = vector.load %arg6[%c0_12, %c256] : memref<16x384xf32, #tpu.memory_space<vmem>>, vector<16x128xf32>
    %15 = vector.shape_cast %14 : vector<16x128xf32> to vector<2x8x128xf32>
    %cst_13 = arith.constant dense<0.000000e+00> : vector<2x8x8xf32>
    %16 = tpu.matmul %11, %13, %cst_13 {dimension_numbers = #tpu.dot_dimension_numbers<[2], [2], [1], [1], [0, 0, 0, 1, 1, 1], [0], [0]>} : vector<2x8x128xf32>, vector<2x8x128xf32>, vector<2x8x8xf32> -> vector<2x8x8xf32>
    %c0_14 = arith.constant 0 : index
    %c0_15 = arith.constant 0 : index
    %c0_16 = arith.constant 0 : index
    %17 = vector.load %arg4[%c0_14, %c0_15, %c0_16] : memref<2x8x8xi8, #tpu.memory_space<vmem>>, vector<2x8x8xi8>
    %c0_i8 = arith.constant 0 : i8
    %18 = vector.broadcast %c0_i8 : i8 to vector<2x8x8xi8>
    %19 = arith.cmpi ne, %17, %18 : vector<2x8x8xi8>
    %cst_17 = arith.constant -1.000000e+09 : f32
    %20 = vector.broadcast %cst_17 : f32 to vector<2x8x8xf32>
    %21 = arith.select %19, %20, %16 : vector<2x8x8xi1>, vector<2x8x8xf32>
    %cst_18 = arith.constant dense<0xFF800000> : vector<2x8xf32>
    %22 = vector.multi_reduction <maximumf>, %21, %cst_18 [2] : vector<2x8x8xf32> to vector<2x8xf32>
    %23 = vector.shape_cast %22 : vector<2x8xf32> to vector<2x8x1xf32>
    %24 = vector.broadcast %23 : vector<2x8x1xf32> to vector<2x8x8xf32>
    %25 = arith.subf %21, %24 : vector<2x8x8xf32>
    %26 = math.exp %25 : vector<2x8x8xf32>
    %cst_19 = arith.constant dense<0.000000e+00> : vector<2x8xf32>
    %27 = vector.multi_reduction <add>, %26, %cst_19 [2] : vector<2x8x8xf32> to vector<2x8xf32>
    %28 = vector.shape_cast %27 : vector<2x8xf32> to vector<2x8x1xf32>
    %29 = vector.broadcast %28 : vector<2x8x1xf32> to vector<2x8x8xf32>
    %30 = arith.divf %26, %29 : vector<2x8x8xf32>
    %cst_20 = arith.constant dense<0.000000e+00> : vector<2x8x128xf32>
    %31 = tpu.matmul %30, %15, %cst_20 {dimension_numbers = #tpu.dot_dimension_numbers<[2], [1], [1], [2], [0, 0, 0, 1, 1, 2], [0], [0]>} : vector<2x8x8xf32>, vector<2x8x128xf32>, vector<2x8x128xf32> -> vector<2x8x128xf32>
    %c0_21 = arith.constant 0 : index
    %c0_22 = arith.constant 0 : index
    %c0_23 = arith.constant 0 : index
    %32 = vector.load %arg5[%c0_21, %c0_22, %c0_23] : memref<2x8x128xf32, #tpu.memory_space<vmem>>, vector<2x8x128xf32>
    tpu.vector_store %arg5[%c0_21, %c0_22, %c0_23], %31 {strides = array<i32>} : memref<2x8x128xf32, #tpu.memory_space<vmem>>, vector<2x8x128xf32>,
    return
  }
  func.func @transform_0(%arg0: i32) -> (i32, i32, i32) {
    %c0_i32 = arith.constant 0 : i32
    %c0_i32_0 = arith.constant 0 : i32
    %c0_i32_1 = arith.constant 0 : i32
    %c0_i32_2 = arith.constant 0 : i32
    return %c0_i32, %c0_i32_0, %c0_i32_1 : i32, i32, i32
  }
  func.func @transform_1(%arg0: i32) -> (i32, i32) {
    %c0_i32 = arith.constant 0 : i32
    %c0_i32_0 = arith.constant 0 : i32
    %c0_i32_1 = arith.constant 0 : i32
    return %c0_i32, %c0_i32_0 : i32, i32
  }
  func.func @transform_2(%arg0: i32) -> (i32, i32) {
    %c0_i32 = arith.constant 0 : i32
    %c0_i32_0 = arith.constant 0 : i32
    %c0_i32_1 = arith.constant 0 : i32
    return %c0_i32, %c0_i32_0 : i32, i32
  }
  func.func @transform_3(%arg0: i32) -> (i32, i32, i32) {
    %c0_i32 = arith.constant 0 : i32
    %c0_i32_0 = arith.constant 0 : i32
    %c0_i32_1 = arith.constant 0 : i32
    %c0_i32_2 = arith.constant 0 : i32
    return %c0_i32, %c0_i32_0, %c0_i32_1 : i32, i32, i32
  }
  func.func @transform_4(%arg0: i32) -> (i32, i32, i32) {
    %c0_i32 = arith.constant 0 : i32
    %c0_i32_0 = arith.constant 0 : i32
    %c0_i32_1 = arith.constant 0 : i32
    %c0_i32_2 = arith.constant 0 : i32
    return %c0_i32, %c0_i32_0, %c0_i32_1 : i32, i32, i32
  }
}

</mosaic_0001>

<llo_original>
// kernel: tpu_custom_call.1
$region0: #{tpu_custom_call.1}
  #allocation0 [shape = 'u32[]', space=smem, size = 0x4, offset = 0x4, fixed_abs, tag = 'smem constant byte address 0x4 - core index']
  #allocation1 [shape = 'u32[72,128]{1,0:T(1,128)}', space=vmem, size = 0x9000, scoped, tag = 'internal scratch']
  #allocation2 [shape = 'f32[16,384]{1,0:T(8,128)}', space=vmem, size = 0x6000, scoped, tag = 'scratch operand']
  %s0 = inlined_call_operand.hbm [shape: f32[2,8,32], index: 0, kind: input, shape index: {}]
  %s1 = inlined_call_operand.hbm [shape: f32[32,384], index: 1, kind: input, shape index: {}]
  %s2 = inlined_call_operand.hbm [shape: f32[1,384], index: 2, kind: input, shape index: {}]
  %s3 = inlined_call_operand.hbm [shape: s8[2,8,8], index: 3, kind: input, shape index: {}]
  %s4 = inlined_call_operand.hbm [shape: f32[2,8,128], index: 4, kind: output, shape index: {}]
  %s5 = sld [smem:[#allocation0]]
  $region42: #{tpu_custom_call.1} parent=0
    _
  %s7 = ssub.s32 1, %s5
  %s8 = scalar_select 0, %s7, %s5
  $region1: #{tpu_custom_call.1} parent=0
    #allocation3 [shape = 'u8[8192]{0}', space=vmem, size = 0x2000, scoped, tag = 'input window, operand 0, single buffered']
    #allocation4 [shape = 's32[1]{0}', space=sflag, size = 0x4, scoped, tag = 'scoped memory for tpu_custom_call.1']
    #allocation5 [shape = 's32[1]{0}', space=sflag, size = 0x4, scoped, tag = 'scoped memory for tpu_custom_call.1']
    #allocation6 [shape = 'u8[49152]{0}', space=vmem, size = 0xc000, scoped, tag = 'input window, operand 1, single buffered']
    #allocation7 [shape = 's32[1]{0}', space=sflag, size = 0x4, scoped, tag = 'scoped memory for tpu_custom_call.1']
    #allocation8 [shape = 'u8[1536]{0}', space=vmem, size = 0x800, scoped, tag = 'input window, operand 2, single buffered']
    #allocation9 [shape = 'u8[2048]{0}', space=vmem, size = 0x800, scoped, tag = 'input window, operand 3, single buffered']
    #allocation10 [shape = 's32[1]{0}', space=sflag, size = 0x4, scoped, tag = 'scoped memory for tpu_custom_call.1']
    #allocation11 [shape = 'u8[8192]{0}', space=vmem, size = 0x2000, scoped, tag = 'output window, operand 0, single buffered']
    %9 = vsyncpa [#allocation4], 0
    %10 = vsyncpa [#allocation7], 0
    %11 = vsyncpa [#allocation10], 0
    %12 = vsyncpa [#allocation5], 0
    // Predicated region
    $region2: #{tpu_custom_call.1} parent=1 // pred_check
      _
    $region3: #{tpu_custom_call.1} parent=1 // pred_check_branch
      %14 = sbr.rel (0) target = $region5
    $region4: #{tpu_custom_call.1} parent=1 // pred_region
      %16 = vsyncadd [#allocation4], 0
      %s17 = sshll.u32 %s0, 4
      %s18 = int_to_ptr.hbm [resolvable:$true] %s17
      %s19 = sshll.u32 [#allocation3], 4
      %s20 = int_to_ptr.vmem [resolvable:$true] %s19
      %25 = dma.hbm_to_vmem [thread:$0]  %s18, 256, %s20, [#allocation4], 128, 128, 8
    $region5: #{tpu_custom_call.1} parent=1 // pred_fallthru
      _
    // Predicated region
    $region6: #{tpu_custom_call.1} parent=1 // pred_check
      _
    $region7: #{tpu_custom_call.1} parent=1 // pred_check_branch
      %27 = sbr.rel (0) target = $region9
    $region8: #{tpu_custom_call.1} parent=1 // pred_region
      %29 = vsyncadd [#allocation7], 0
      %s30 = sshll.u32 %s1, 4
      %s31 = int_to_ptr.hbm [resolvable:$true] %s30
      %s32 = sshll.u32 [#allocation6], 4
      %s33 = int_to_ptr.vmem [resolvable:$true] %s32
      %38 = dma.hbm_to_vmem [thread:$0]  %s31, 1536, %s33, [#allocation7], 384, 384, 24
    $region9: #{tpu_custom_call.1} parent=1 // pred_fallthru
      _
    // Predicated region
    $region10: #{tpu_custom_call.1} parent=1 // pred_check
      _
    $region11: #{tpu_custom_call.1} parent=1 // pred_check_branch
      %40 = sbr.rel (0) target = $region13
    $region12: #{tpu_custom_call.1} parent=1 // pred_region
      %42 = vsyncadd [#allocation7], 0
      %s44 = sshll.u32 %s2, 4
      %s45 = int_to_ptr.hbm [resolvable:$true] %s44
      %s46 = sshll.u32 [#allocation8], 4
      %s47 = int_to_ptr.vmem [resolvable:$true] %s46
      %49 = dma.hbm_to_vmem [thread:$0]  %s45, 48, %s47, [#allocation7]
    $region13: #{tpu_custom_call.1} parent=1 // pred_fallthru
      _
    // Predicated region
    $region14: #{tpu_custom_call.1} parent=1 // pred_check
      _
    $region15: #{tpu_custom_call.1} parent=1 // pred_check_branch
      %51 = sbr.rel (0) target = $region17
    $region16: #{tpu_custom_call.1} parent=1 // pred_region
      %53 = vsyncadd [#allocation10], 0
      %s54 = sshll.u32 %s3, 4
      %s55 = int_to_ptr.hbm [resolvable:$true] %s54
      %s56 = sshll.u32 [#allocation9], 4
      %s57 = int_to_ptr.vmem [resolvable:$true] %s56
      %62 = dma.hbm_to_vmem [thread:$0]  %s55, 64, %s57, [#allocation10], 32, 32, 2
    $region17: #{tpu_custom_call.1} parent=1 // pred_fallthru
      _
    // Predicated region
    $region18: #{tpu_custom_call.1} parent=1 // pred_check
      _
    $region19: #{tpu_custom_call.1} parent=1 // pred_check_branch
      %64 = sbr.rel (0) target = $region21
    $region20: #{tpu_custom_call.1} parent=1 // pred_region
      %66 = dma.done [#allocation4], 256
    $region21: #{tpu_custom_call.1} parent=1 // pred_fallthru
      _
    // Predicated region
    $region22: #{tpu_custom_call.1} parent=1 // pred_check
      _
    $region23: #{tpu_custom_call.1} parent=1 // pred_check_branch
      %68 = sbr.rel (0) target = $region25
    $region24: #{tpu_custom_call.1} parent=1 // pred_region
      %70 = dma.done [#allocation7], 1536
    $region25: #{tpu_custom_call.1} parent=1 // pred_fallthru
      _
    // Predicated region
    $region26: #{tpu_custom_call.1} parent=1 // pred_check
      _
    $region27: #{tpu_custom_call.1} parent=1 // pred_check_branch
      %72 = sbr.rel (0) target = $region29
    $region28: #{tpu_custom_call.1} parent=1 // pred_region
      %74 = dma.done [#allocation7], 48
    $region29: #{tpu_custom_call.1} parent=1 // pred_fallthru
      _
    // Predicated region
    $region30: #{tpu_custom_call.1} parent=1 // pred_check
      _
    $region31: #{tpu_custom_call.1} parent=1 // pred_check_branch
      %76 = sbr.rel (0) target = $region33
    $region32: #{tpu_custom_call.1} parent=1 // pred_region
      %78 = dma.done [#allocation10], 64
    $region33: #{tpu_custom_call.1} parent=1 // pred_fallthru
      _
    %v81 = vld [vmem:[#allocation3] sm:$0xff]
    %v82 = vld [vmem:[#allocation3 + $0x8] sm:$0xff]
    %v83 = vld [vmem:[#allocation6] sm:$0xff]
    %v84 = vld [vmem:[#allocation6 + $0x8] sm:$0xff]
    %v85 = vld [vmem:[#allocation6 + $0x10] sm:$0xff]
    %v86 = vld [vmem:[#allocation6 + $0x18] sm:$0xff]
    %v87 = vld [vmem:[#allocation6 + $0x20] sm:$0xff]
    %v88 = vld [vmem:[#allocation6 + $0x28] sm:$0xff]
    %v89 = vld [vmem:[#allocation6 + $0x30] sm:$0xff]
    %v90 = vld [vmem:[#allocation6 + $0x38] sm:$0xff]
    %v91 = vld [vmem:[#allocation6 + $0x40] sm:$0xff]
    %v92 = vld [vmem:[#allocation6 + $0x48] sm:$0xff]
    %v93 = vld [vmem:[#allocation6 + $0x50] sm:$0xff]
    %v94 = vld [vmem:[#allocation6 + $0x58] sm:$0xff]
    %v95 = vld [vmem:[#allocation8] sm:$0x7]
    %v97 = vperm.slane %v95, 0
    %v98 = vperm.slane %v95, 1
    %v99 = vperm.slane %v95, 2
    %vm103 = vcmask 261120
    %v105 = vsel %vm103, %v81, 0
    %v108 = vsel %vm103, %v82, 0
    %110 = vmatpush.msra.mxu0 0.0
    %111 = vmatpush.msra.mxu0 0.0
    %112 = vmatpush.msra.mxu0 0.0
    %113 = vmatpush.msra.mxu0 0.0
    %114 = vmatpush.msra.mxu0 0.0
    %115 = vmatpush.msra.mxu0 0.0
    %116 = vmatpush.msra.mxu0 0.0
    %117 = vmatpush.msra.mxu0 0.0
    %118 = vmatpush.msra.mxu0 0.0
    %119 = vmatpush.msra.mxu0 0.0
    %120 = vmatpush.msra.mxu0 0.0
    %121 = vmatpush.msra.mxu0 0.0
    %122 = vmatpush.msra.mxu0 %v92
    %123 = vmatpush.msra.mxu0 %v89
    %124 = vmatpush.msra.mxu0 %v86
    %125 = vmatpush.msra.mxu0 %v83
    %126 = vmatmul.f32.gmra.mxu0 %v105
    %v127 = vpop.f32.mrf.mxu0
    %v128 = vadd.f32 %v97, %v127
    %129 = vmatmul.f32.gmra.mxu0 %v108
    %v130 = vpop.f32.mrf.mxu0
    %v131 = vadd.f32 %v97, %v130
    %132 = vdwg.mxu0
    %133 = vmatpush.msra.mxu0 0.0
    %134 = vmatpush.msra.mxu0 0.0
    %135 = vmatpush.msra.mxu0 0.0
    %136 = vmatpush.msra.mxu0 0.0
    %137 = vmatpush.msra.mxu0 0.0
    %138 = vmatpush.msra.mxu0 0.0
    %139 = vmatpush.msra.mxu0 0.0
    %140 = vmatpush.msra.mxu0 0.0
    %141 = vmatpush.msra.mxu0 0.0
    %142 = vmatpush.msra.mxu0 0.0
    %143 = vmatpush.msra.mxu0 0.0
    %144 = vmatpush.msra.mxu0 0.0
    %145 = vmatpush.msra.mxu0 %v93
    %146 = vmatpush.msra.mxu0 %v90
    %147 = vmatpush.msra.mxu0 %v87
    %148 = vmatpush.msra.mxu0 %v84
    %149 = vmatmul.f32.gmra.mxu0 %v105
    %v150 = vpop.f32.mrf.mxu0
    %v151 = vadd.f32 %v98, %v150
    %152 = vmatmul.f32.gmra.mxu0 %v108
    %v153 = vpop.f32.mrf.mxu0
    %v154 = vadd.f32 %v98, %v153
    %155 = vdwg.mxu0
    %156 = vmatpush.msra.mxu0 0.0
    %157 = vmatpush.msra.mxu0 0.0
    %158 = vmatpush.msra.mxu0 0.0
    %159 = vmatpush.msra.mxu0 0.0
    %160 = vmatpush.msra.mxu0 0.0
    %161 = vmatpush.msra.mxu0 0.0
    %162 = vmatpush.msra.mxu0 0.0
    %163 = vmatpush.msra.mxu0 0.0
    %164 = vmatpush.msra.mxu0 0.0
    %165 = vmatpush.msra.mxu0 0.0
    %166 = vmatpush.msra.mxu0 0.0
    %167 = vmatpush.msra.mxu0 0.0
    %168 = vmatpush.msra.mxu0 %v94
    %169 = vmatpush.msra.mxu0 %v91
    %170 = vmatpush.msra.mxu0 %v88
    %171 = vmatpush.msra.mxu0 %v85
    %172 = vmatmul.f32.gmra.mxu0 %v105
    %v173 = vpop.f32.mrf.mxu0
    %v174 = vadd.f32 %v99, %v173
    %175 = vmatmul.f32.gmra.mxu0 %v108
    %v176 = vpop.f32.mrf.mxu0
    %v177 = vadd.f32 %v99, %v176
    %178 = vdwg.mxu0
    %179 = vst [vmem:[#allocation2] sm:$0xff] %v128
    %180 = vst [vmem:[#allocation2 + $0x8] sm:$0xff] %v151
    %181 = vst [vmem:[#allocation2 + $0x10] sm:$0xff] %v174
    %182 = vst [vmem:[#allocation2 + $0x18] sm:$0xff] %v131
    %183 = vst [vmem:[#allocation2 + $0x20] sm:$0xff] %v154
    %184 = vst [vmem:[#allocation2 + $0x28] sm:$0xff] %v177
    %v185 = vld [vmem:[#allocation2] sm:$0xff]
    %v186 = vld [vmem:[#allocation2 + $0x18] sm:$0xff]
    %v187 = vmul.f32 %v185, 0.35355338
    %v188 = vmul.f32 %v186, 0.35355338
    %v189 = vld [vmem:[#allocation2 + $0x8] sm:$0xff]
    %v190 = vld [vmem:[#allocation2 + $0x20] sm:$0xff]
    %v191 = vld [vmem:[#allocation2 + $0x10] sm:$0xff]
    %v192 = vld [vmem:[#allocation2 + $0x28] sm:$0xff]
    %193 = vmatpush.xpose.msra.mxu0 0.0
    %194 = vmatpush.xpose.msra.mxu0 0.0
    %195 = vmatpush.xpose.msra.mxu0 0.0
    %196 = vmatpush.xpose.msra.mxu0 0.0
    %197 = vmatpush.xpose.msra.mxu0 0.0
    %198 = vmatpush.xpose.msra.mxu0 0.0
    %199 = vmatpush.xpose.msra.mxu0 0.0
    %200 = vmatpush.xpose.msra.mxu0 0.0
    %201 = vmatpush.xpose.msra.mxu0 0.0
    %202 = vmatpush.xpose.msra.mxu0 0.0
    %203 = vmatpush.xpose.msra.mxu0 0.0
    %204 = vmatpush.xpose.msra.mxu0 0.0
    %205 = vmatpush.xpose.msra.mxu0 0.0
    %206 = vmatpush.xpose.msra.mxu0 0.0
    %207 = vmatpush.xpose.msra.mxu0 0.0
    %208 = vmatpush.xpose.msra.mxu0 %v189
    %209 = vmatmul.f32.gmra.mxu0 %v187
    %v210 = vpop.f32.mrf.mxu0
    %v211 = vadd.f32 0.0, %v210
    %212 = vdwg.mxu0
    %213 = vmatpush.xpose.msra.mxu0 0.0
    %214 = vmatpush.xpose.msra.mxu0 0.0
    %215 = vmatpush.xpose.msra.mxu0 0.0
    %216 = vmatpush.xpose.msra.mxu0 0.0
    %217 = vmatpush.xpose.msra.mxu0 0.0
    %218 = vmatpush.xpose.msra.mxu0 0.0
    %219 = vmatpush.xpose.msra.mxu0 0.0
    %220 = vmatpush.xpose.msra.mxu0 0.0
    %221 = vmatpush.xpose.msra.mxu0 0.0
    %222 = vmatpush.xpose.msra.mxu0 0.0
    %223 = vmatpush.xpose.msra.mxu0 0.0
    %224 = vmatpush.xpose.msra.mxu0 0.0
    %225 = vmatpush.xpose.msra.mxu0 0.0
    %226 = vmatpush.xpose.msra.mxu0 0.0
    %227 = vmatpush.xpose.msra.mxu0 0.0
    %228 = vmatpush.xpose.msra.mxu0 %v190
    %229 = vmatmul.f32.gmra.mxu0 %v188
    %v230 = vpop.f32.mrf.mxu0
    %v231 = vadd.f32 0.0, %v230
    %232 = vdwg.mxu0
    %v233 = vld [vmem:[#allocation9] sm:$0x3]
    %v234 = vld [vmem:[#allocation9 + $0x2] sm:$0x3]
    %vm235 = vnez %v233
    %vm236 = vnez %v234
    %v237 = vsel %vm235, 16843009, 0
    %v238 = vsel %vm236, 16843009, 0
    %v239 = vunpack.c.0.s8 %v237
    %v240 = vunpack.c.0.s8 %v238
    %vm241 = vcmp.ne.s32.totalorder %v239, 0
    %vm242 = vcmp.ne.s32.totalorder %v240, 0
    %v243 = vsel %vm241, -1e+09, %v211
    %v244 = vsel %vm242, -1e+09, %v231
    %vm245 = vcmask 64512
    %v246 = vsel %vm245, %v243, -inf
    %247 = vmax.xlane.f32.xlu0 %v246
    %v248 = vpop.xlane.xlu0 %247
    %v249 = vsel %vm245, %v244, -inf
    %250 = vmax.xlane.f32.xlu0 %v249
    %v251 = vpop.xlane.xlu0 %250
    %v252 = vsub.f32 %v243, %v248
    %v253 = vsub.f32 %v244, %v251
    %v254 = vmul.f32 %v252, 1.442695
    %v255 = vpow.pop %v254
    %v256 = vmul.f32 %v253, 1.442695
    %v257 = vpow.pop %v256
    %v258 = vsel %vm245, %v255, 0.0
    %259 = vadd.xlane.f32.xlu0 %v258
    %v260 = vpop.xlane.xlu0 %259
    %v261 = vsel %vm245, %v257, 0.0
    %262 = vadd.xlane.f32.xlu0 %v261
    %v263 = vpop.xlane.xlu0 %262
    %v264 = vrcp.pop %v260
    %v265 = vmul.f32 %v260, %v264
    %v266 = vsub.f32 1.0, %v265
    %v267 = vmul.f32 %v264, %v266
    %v268 = vadd.f32 %v264, %v267
    %vm269 = vweird.f32 %v260
    %vm270 = vweird.f32 %v264
    %vm271 = vmor %vm269, %vm270
    %v272 = vsel %vm271, %v264, %v268
    %v273 = vand.u32 2147483647, %v260
    %vm274 = vcmp.eq.f32.partialorder %v273, 8.507059e+37
    %v275 = vand.u32 %v260, 2147483648
    %v276 = vor.u32 1.1754944e-38, %v275
    %v277 = vsel %vm274, %v276, %v272
    %v278 = vmul.f32 %v255, %v277
    %v279 = vrcp.pop %v263
    %v280 = vmul.f32 %v263, %v279
    %v281 = vsub.f32 1.0, %v280
    %v282 = vmul.f32 %v279, %v281
    %v283 = vadd.f32 %v279, %v282
    %vm284 = vweird.f32 %v263
    %vm285 = vweird.f32 %v279
    %vm286 = vmor %vm284, %vm285
    %v287 = vsel %vm286, %v279, %v283
    %v288 = vand.u32 2147483647, %v263
    %vm289 = vcmp.eq.f32.partialorder %v288, 8.507059e+37
    %v290 = vand.u32 %v263, 2147483648
    %v291 = vor.u32 1.1754944e-38, %v290
    %v292 = vsel %vm289, %v291, %v287
    %v293 = vmul.f32 %v257, %v292
    %v295 = vsel %vm245, %v278, 0
    %297 = vmatpush.msra.mxu0 0.0
    %298 = vmatpush.msra.mxu0 0.0
    %299 = vmatpush.msra.mxu0 0.0
    %300 = vmatpush.msra.mxu0 0.0
    %301 = vmatpush.msra.mxu0 0.0
    %302 = vmatpush.msra.mxu0 0.0
    %303 = vmatpush.msra.mxu0 0.0
    %304 = vmatpush.msra.mxu0 0.0
    %305 = vmatpush.msra.mxu0 0.0
    %306 = vmatpush.msra.mxu0 0.0
    %307 = vmatpush.msra.mxu0 0.0
    %308 = vmatpush.msra.mxu0 0.0
    %309 = vmatpush.msra.mxu0 0.0
    %310 = vmatpush.msra.mxu0 0.0
    %311 = vmatpush.msra.mxu0 0.0
    %312 = vmatpush.msra.mxu0 %v191
    %313 = vmatmul.f32.gmra.mxu0 %v295
    %v314 = vpop.f32.mrf.mxu0
    %v315 = vadd.f32 0.0, %v314
    %316 = vdwg.mxu0
    %v318 = vsel %vm245, %v293, 0
    %320 = vmatpush.msra.mxu0 0.0
    %321 = vmatpush.msra.mxu0 0.0
    %322 = vmatpush.msra.mxu0 0.0
    %323 = vmatpush.msra.mxu0 0.0
    %324 = vmatpush.msra.mxu0 0.0
    %325 = vmatpush.msra.mxu0 0.0
    %326 = vmatpush.msra.mxu0 0.0
    %327 = vmatpush.msra.mxu0 0.0
    %328 = vmatpush.msra.mxu0 0.0
    %329 = vmatpush.msra.mxu0 0.0
    %330 = vmatpush.msra.mxu0 0.0
    %331 = vmatpush.msra.mxu0 0.0
    %332 = vmatpush.msra.mxu0 0.0
    %333 = vmatpush.msra.mxu0 0.0
    %334 = vmatpush.msra.mxu0 0.0
    %335 = vmatpush.msra.mxu0 %v192
    %336 = vmatmul.f32.gmra.mxu0 %v318
    %v337 = vpop.f32.mrf.mxu0
    %v338 = vadd.f32 0.0, %v337
    %339 = vdwg.mxu0
    %340 = vst [vmem:[#allocation11] sm:$0xff] %v315
    %341 = vst [vmem:[#allocation11 + $0x8] sm:$0xff] %v338
    // Predicated region
    $region34: #{tpu_custom_call.1} parent=1 // pred_check
      _
    $region35: #{tpu_custom_call.1} parent=1 // pred_check_branch
      %343 = sbr.rel (0) target = $region37
    $region36: #{tpu_custom_call.1} parent=1 // pred_region
      %345 = vsyncadd [#allocation5], 0
      %s346 = sshll.u32 [#allocation11], 4
      %s347 = int_to_ptr.vmem [resolvable:$true] %s346
      %s348 = sshll.u32 %s4, 4
      %s349 = int_to_ptr.hbm [resolvable:$true] %s348
      %354 = dma.vmem_to_hbm [thread:$0]  %s347, 256, %s349, [#allocation5], 128, 128, 8
    $region37: #{tpu_custom_call.1} parent=1 // pred_fallthru
      _
    // Predicated region
    $region38: #{tpu_custom_call.1} parent=1 // pred_check
      _
    $region39: #{tpu_custom_call.1} parent=1 // pred_check_branch
      %356 = sbr.rel (0) target = $region41
    $region40: #{tpu_custom_call.1} parent=1 // pred_region
      %358 = dma.done [#allocation5], 256
    $region41: #{tpu_custom_call.1} parent=1 // pred_fallthru
      _
    %359 = vsyncpa [#allocation4], 1
    %360 = vsyncpa [#allocation7], 1
    %361 = vsyncpa [#allocation10], 1
    %362 = vsyncpa [#allocation5], 1

</llo_original>
